<compile_context>
chip_gen: v7x
topology: tpu7x:2x2x1
jax: 0.10.0
libtpu: 0.0.40
codegen_flags: <defaults>
</compile_context>

<pallas_src>
import functools

import jax
import jax.numpy as jnp
from jax.experimental import pallas as pl
from jax.experimental.pallas import tpu as pltpu


# ----------------------------------------------------------------------------
# Kernels
# ----------------------------------------------------------------------------
def _fused_conv_bn_kernel(p_ref, w_ref, gamma_ref, beta_ref, o_ref,
                          sum_acc, sq_acc, *, eps, inv_m, tm):
    """Single-pass fused conv-matmul + BN.  Output block is VMEM-resident."""
    i = pl.program_id(0)

    @pl.when(i == 0)
    def _init():
        sum_acc[...] = jnp.zeros_like(sum_acc)
        sq_acc[...] = jnp.zeros_like(sq_acc)

    # MXU matmul, bf16 x bf16 -> f32 accumulation.  The contraction dim K=36 is
    # left unpadded; Mosaic relayouts/masks the minor dim in VMEM, while HBM
    # traffic for the dominant patch stream stays at 72 B/row.
    y = jnp.dot(p_ref[...], w_ref[...], preferred_element_type=jnp.float32)

    # Per-channel batch-stat accumulators. With Cout padded to 128 lanes these
    # axis=0 reductions run on fully occupied vregs.  NOTE: stats use the
    # one-pass E[x^2]-E[x]^2 formula on the bf16-input matmul output; fine at
    # this scale/tolerance (see review), use Welford/two-pass if generalized.
    sum_acc[...] += jnp.sum(y, axis=0, keepdims=True)
    sq_acc[...] += jnp.sum(y * y, axis=0, keepdims=True)

    # Store the pre-BN tile directly into the resident output block (no y_acc).
    row0 = pl.multiple_of(i * tm, tm)
    o_ref[pl.ds(row0, tm), :] = y.astype(o_ref.dtype)

    @pl.when(i == pl.num_programs(0) - 1)
    def _finalize():
        mean = sum_acc[...] * inv_m                                   # [1, Cp]
        var = jnp.maximum(sq_acc[...] * inv_m - mean * mean, 0.0)     # biased
        scale = jax.lax.rsqrt(var + eps) * gamma_ref[...]
        shift = beta_ref[...] - mean * scale
        # Normalize the resident output IN PLACE (lane-dense, unmasked stores).
        o_ref[...] = (o_ref[...].astype(jnp.float32) * scale
                      + shift).astype(o_ref.dtype)


def _conv_stats_kernel(p_ref, w_ref, sum_ref, sq_ref):
    """Two-pass fallback, pass 1: per-channel sum / sum-of-squares."""
    i = pl.program_id(0)

    @pl.when(i == 0)
    def _init():
        sum_ref[...] = jnp.zeros_like(sum_ref)
        sq_ref[...] = jnp.zeros_like(sq_ref)

    y = jnp.dot(p_ref[...], w_ref[...], preferred_element_type=jnp.float32)
    sum_ref[...] += jnp.sum(y, axis=0, keepdims=True)
    sq_ref[...] += jnp.sum(y * y, axis=0, keepdims=True)


def _conv_norm_kernel(p_ref, w_ref, scale_ref, shift_ref, o_ref):
    """Two-pass fallback, pass 2: recompute matmul tile, normalize, stream out."""
    y = jnp.dot(p_ref[...], w_ref[...], preferred_element_type=jnp.float32)
    o_ref[...] = (y * scale_ref[...] + shift_ref[...]).astype(o_ref.dtype)


# ----------------------------------------------------------------------------
# Wrappers
# ----------------------------------------------------------------------------
def _round_up(x, m):
    return (x + m - 1) // m * m


def _im2col(x, kh, kw, sh, sw, ph, pw):
    # x: NCHW -> patches [N*OH*OW, Cin*KH*KW] (column order matches PyTorch's
    # (Cin, KH, KW) weight flattening).  Kept as cheap XLA glue at this size.
    # TODO(synk): replace im2col with an in-kernel shift-and-accumulate conv
    # (raw x via memory_space=pl.ANY, 9 shifted-window matmuls) to remove the
    # 9x HBM expansion for large N*H*W workloads.
    N, C, H, W = x.shape
    xp = jnp.pad(x, ((0, 0), (0, 0), (ph, ph), (pw, pw)))
    OH = (H + 2 * ph - kh) // sh + 1
    OW = (W + 2 * pw - kw) // sw + 1
    cols = []
    for i in range(kh):
        for j in range(kw):
            cols.append(xp[:, :, i:i + sh * OH:sh, j:j + sw * OW:sw])
    cols = jnp.stack(cols, axis=0).reshape(kh, kw, N, C, OH, OW)
    cols = cols.transpose(2, 4, 5, 3, 0, 1).reshape(N * OH * OW, C * kh * kw)
    return cols, OH, OW


def _two_pass_conv_bn(p, w, g, b, *, inv_m, eps, tm, Mp, Kd, Cp, out_dtype,
                      vmem_limit):
    """Tiled two-pass BN: stats pass + streamed normalize pass (large-M path)."""
    sum_, sq = pl.pallas_call(
        _conv_stats_kernel,
        out_shape=(jax.ShapeDtypeStruct((1, Cp), jnp.float32),
                   jax.ShapeDtypeStruct((1, Cp), jnp.float32)),
        grid=(Mp // tm,),
        in_specs=[pl.BlockSpec((tm, Kd), lambda i: (i, 0)),
                  pl.BlockSpec((Kd, Cp), lambda i: (0, 0))],
        out_specs=(pl.BlockSpec((1, Cp), lambda i: (0, 0)),
                   pl.BlockSpec((1, Cp), lambda i: (0, 0))),
        compiler_params=pltpu.CompilerParams(
            dimension_semantics=("arbitrary",),        # stat accumulation axis
            vmem_limit_bytes=vmem_limit),
    )(p, w)

    mean = sum_ * inv_m
    var = jnp.maximum(sq * inv_m - mean * mean, 0.0)
    scale = jax.lax.rsqrt(var + eps) * g
    shift = b - mean * scale

    out = pl.pallas_call(
        _conv_norm_kernel,
        out_shape=jax.ShapeDtypeStruct((Mp, Cp), out_dtype),
        grid=(Mp // tm,),
        in_specs=[pl.BlockSpec((tm, Kd), lambda i: (i, 0)),
                  pl.BlockSpec((Kd, Cp), lambda i: (0, 0)),
                  pl.BlockSpec((1, Cp), lambda i: (0, 0)),
                  pl.BlockSpec((1, Cp), lambda i: (0, 0))],
        out_specs=pl.BlockSpec((tm, Cp), lambda i: (i, 0)),
        compiler_params=pltpu.CompilerParams(
            dimension_semantics=("parallel",),         # tiles independent here
            vmem_limit_bytes=vmem_limit),
    )(p, w, scale, shift)
    return out


def fused_conv_bn(patches, w_mat, gamma, beta, m_valid, *, eps=1e-5,
                  tm_max=512, out_dtype=jnp.float32,
                  fused_vmem_budget=24 * 1024 * 1024):
    """patches: [M, K] (bf16, K unpadded), w_mat: [K, Cout], gamma/beta: [Cout].

    Returns [M, Cout] in out_dtype.
    """
    M, Kd = patches.shape
    _, Cout = w_mat.shape

    # Lane-dense channel padding.  128 lanes is right for this toy Cout=8; for
    # real channel counts target multiples of 256 on v6e/v7x (2x256 MXU) and
    # 128 on v5e.
    Cp = _round_up(Cout, 128)
    tm = min(tm_max, _round_up(M, 8))
    Mp = _round_up(M, tm)

    # Rows are padded to the tile; K stays UNPADDED (full-extent last dim in
    # the BlockSpec).  Invariant: padded patch rows are exactly zero, so they
    # contribute 0 to sum/sumsq, are divided by m_valid, and are sliced off.
    p = patches
    if Mp != M:
        p = jnp.pad(p, ((0, Mp - M), (0, 0)))
    w = jnp.zeros((Kd, Cp), patches.dtype).at[:, :Cout].set(
        w_mat.astype(patches.dtype))
    g = jnp.ones((1, Cp), jnp.float32).at[0, :Cout].set(
        gamma.astype(jnp.float32))
    b = jnp.zeros((1, Cp), jnp.float32).at[0, :Cout].set(
        beta.astype(jnp.float32))

    inv_m = 1.0 / float(m_valid)
    out_itemsize = jnp.dtype(out_dtype).itemsize

    # 32 MiB scoped VMEM is safe on every current generation (v5e/v6e physical
    # 128 MiB, v7x physical 64 MiB).
    vmem_limit = 32 * 1024 * 1024

    # Resident-VMEM estimate for the single-pass fused path: the whole [Mp, Cp]
    # pre-BN activation lives in the output block until the epilogue.
    # TODO(synk): re-derive the budget per generation (query pltpu.get_tpu_info)
    # and split the row axis across v7x's two TensorCores with a cross-core
    # reduction of sum/sq before the epilogue.
    resident = 2 * Mp * Cp * out_itemsize            # resident output block
    resident += 2 * tm * Kd * 2 + 2 * Kd * Cp * 2    # double-buffered bf16 in
    resident += 6 * Cp * 4                           # gamma/beta + stat scratch
    use_fused = resident <= fused_vmem_budget

    if use_fused:
        kernel = functools.partial(_fused_conv_bn_kernel, eps=eps, inv_m=inv_m,
                                   tm=tm)
        out = pl.pallas_call(
            kernel,
            out_shape=jax.ShapeDtypeStruct((Mp, Cp), out_dtype),
            grid=(Mp // tm,),
            in_specs=[
                pl.BlockSpec((tm, Kd), lambda i: (i, 0)),   # patches, K unpadded
                pl.BlockSpec((Kd, Cp), lambda i: (0, 0)),   # weights, resident
                pl.BlockSpec((1, Cp), lambda i: (0, 0)),    # gamma
                pl.BlockSpec((1, Cp), lambda i: (0, 0)),    # beta
            ],
            out_specs=pl.BlockSpec((Mp, Cp), lambda i: (0, 0)),  # VMEM-resident
            scratch_shapes=[
                pltpu.VMEM((1, Cp), jnp.float32),   # per-channel sum
                pltpu.VMEM((1, Cp), jnp.float32),   # per-channel sum of squares
            ],
            compiler_params=pltpu.CompilerParams(
                # Row axis carries BN reduction + resident output -> arbitrary.
                dimension_semantics=("arbitrary",),
                vmem_limit_bytes=vmem_limit),
        )(p, w, g, b)
    else:
        out = _two_pass_conv_bn(p, w, g, b, inv_m=inv_m, eps=eps, tm=tm,
                                Mp=Mp, Kd=Kd, Cp=Cp, out_dtype=out_dtype,
                                vmem_limit=vmem_limit)

    return out[:M, :Cout]


def simple_conv_forward(x, conv_w, bn_gamma, bn_beta, stride=(1, 1), eps=1e-5,
                        **kwargs):
    """x: NCHW float32. conv_w: (Cout, Cin, KH, KW) (PyTorch layout)."""
    Cout, Cin, KH, KW = conv_w.shape
    ph, pw = KH // 2, KW // 2
    if isinstance(stride, int):
        stride = (stride, stride)
    sh, sw = stride
    N = x.shape[0]

    # Cast the small Cin-channel input to bf16 ONCE, before the 9x im2col
    # expansion (avoids an extra cast pass over the M*K patch data).
    patches, OH, OW = _im2col(x.astype(jnp.bfloat16), KH, KW, sh, sw, ph, pw)
    w_mat = conv_w.reshape(Cout, Cin * KH * KW).T          # [Cin*KH*KW, Cout]

    y = fused_conv_bn(patches, w_mat, bn_gamma, bn_beta,
                      m_valid=N * OH * OW, eps=eps, **kwargs)

    # NCHW to match the PyTorch module; if the consumer accepts NHWC, drop
    # this transpose (it is a full extra HBM read+write of the activation).
    return y.reshape(N, OH, OW, Cout).transpose(0, 3, 1, 2)


if __name__ == "__main__":
    # Module config: simple_conv(in_plane=4, out_plane=8, kernel_size=3, stride=(1,1))
    N, Cin, H, W = 2, 4, 16, 16
    Cout, K = 8, 3

    key = jax.random.PRNGKey(0)
    kx, kw = jax.random.split(key)
    x = jax.random.normal(kx, (N, Cin, H, W), dtype=jnp.float32)
    conv_w = jax.random.normal(kw, (Cout, Cin, K, K), dtype=jnp.float32) * 0.1
    bn_gamma = jnp.ones((Cout,), dtype=jnp.float32)   # nn.BatchNorm2d default weight
    bn_beta = jnp.zeros((Cout,), dtype=jnp.float32)   # nn.BatchNorm2d default bias

    # Pure-JAX f32 reference (training-mode BN: biased batch variance).
    ref = jax.lax.conv_general_dilated(
        x, conv_w, window_strides=(1, 1),
        padding=((K // 2, K // 2), (K // 2, K // 2)),
        dimension_numbers=("NCHW", "OIHW", "NCHW"))
    mean = ref.mean(axis=(0, 2, 3), keepdims=True)
    var = ref.var(axis=(0, 2, 3), keepdims=True)
    ref = (ref - mean) * jax.lax.rsqrt(var + 1e-5)
    ref = ref * bn_gamma.reshape(1, -1, 1, 1) + bn_beta.reshape(1, -1, 1, 1)

    def check(out, tag):
        assert out.shape == (N, Cout, H, W), (tag, out.shape)
        err = float(jnp.max(jnp.abs(out.astype(jnp.float32) - ref)))
        assert err < 5e-2, f"{tag}: max abs error vs reference: {err}"

    # 1) Fused single-pass path, single 512-row tile (grid = 1).
    out = simple_conv_forward(x, conv_w, bn_gamma, bn_beta, stride=(1, 1))
    jax.block_until_ready(out)
    check(out, "fused/tm=512")

    # 2) Fused path with a 4-step grid (exercises cross-step stat accumulation
    #    and row-offset stores into the resident output block).
    out2 = simple_conv_forward(x, conv_w, bn_gamma, bn_beta, stride=(1, 1),
                               tm_max=128)
    jax.block_until_ready(out2)
    check(out2, "fused/tm=128")

    # 3) Two-pass fallback path (forced via a zero VMEM budget), as used when
    #    the resident activation would not fit VMEM (e.g. large M on v7x).
    out3 = simple_conv_forward(x, conv_w, bn_gamma, bn_beta, stride=(1, 1),
                               fused_vmem_budget=0)
    jax.block_until_ready(out3)
    check(out3, "two-pass")

    print("KERNEL_OK")
</pallas_src>

<mosaic_0001>
module attributes {stable_mosaic.version = 11 : i64} {
  func.func @_fused_conv_bn_kernel(%arg0: i32, %arg1: memref<512x36xbf16, #tpu.memory_space<vmem>>, %arg2: memref<36x128xbf16, #tpu.memory_space<vmem>>, %arg3: memref<1x128xf32, #tpu.memory_space<vmem>>, %arg4: memref<1x128xf32, #tpu.memory_space<vmem>>, %arg5: memref<512x128xf32, #tpu.memory_space<vmem>>, %arg6: memref<1x128xf32, #tpu.memory_space<vmem>>, %arg7: memref<1x128xf32, #tpu.memory_space<vmem>>) attributes {dimension_semantics = [#tpu.dimension_semantics<arbitrary>], iteration_bounds = array<i64: 1>, scalar_prefetch = 0 : i64, scratch_operands = 2 : i64, tpu.core_type = #tpu.core_type<tc>, window_params = [{transform_indices = @transform_0, window_bounds = array<i64: 512, 36>}, {pipeline_mode = #tpu.pipeline_mode<synchronous>, transform_indices = @transform_1, window_bounds = array<i64: 36, 128>}, {pipeline_mode = #tpu.pipeline_mode<synchronous>, transform_indices = @transform_2, window_bounds = array<i64: 1, 128>}, {pipeline_mode = #tpu.pipeline_mode<synchronous>, transform_indices = @transform_3, window_bounds = array<i64: 1, 128>}, {pipeline_mode = #tpu.pipeline_mode<synchronous>, transform_indices = @transform_4, window_bounds = array<i64: 512, 128>}]} {
    %c0_i32 = arith.constant 0 : i32
    %0 = arith.cmpi eq, %arg0, %c0_i32 : i32
    %1 = arith.extui %0 : i1 to i32
    %c0_i32_0 = arith.constant 0 : i32
    %2 = arith.cmpi ne, %1, %c0_i32_0 : i32
    scf.if %2 {
      %cst_17 = arith.constant 0.000000e+00 : f32
      %24 = vector.broadcast %cst_17 : f32 to vector<1x128xf32>
      %c0_18 = arith.constant 0 : index
      %c0_19 = arith.constant 0 : index
      %25 = vector.load %arg6[%c0_18, %c0_19] : memref<1x128xf32, #tpu.memory_space<vmem>>, vector<1x128xf32>
      tpu.vector_store %arg6[%c0_18, %c0_19], %24 {strides = array<i32>} : memref<1x128xf32, #tpu.memory_space<vmem>>, vector<1x128xf32>,
      %cst_20 = arith.constant 0.000000e+00 : f32
      %26 = vector.broadcast %cst_20 : f32 to vector<1x128xf32>
      %c0_21 = arith.constant 0 : index
      %c0_22 = arith.constant 0 : index
      %27 = vector.load %arg7[%c0_21, %c0_22] : memref<1x128xf32, #tpu.memory_space<vmem>>, vector<1x128xf32>
      tpu.vector_store %arg7[%c0_21, %c0_22], %26 {strides = array<i32>} : memref<1x128xf32, #tpu.memory_space<vmem>>, vector<1x128xf32>,
    } else {
    }
    %c0 = arith.constant 0 : index
    %c0_1 = arith.constant 0 : index
    %3 = vector.load %arg1[%c0, %c0_1] : memref<512x36xbf16, #tpu.memory_space<vmem>>, vector<512x36xbf16>
    %c0_2 = arith.constant 0 : index
    %c0_3 = arith.constant 0 : index
    %4 = vector.load %arg2[%c0_2, %c0_3] : memref<36x128xbf16, #tpu.memory_space<vmem>>, vector<36x128xbf16>
    %cst = arith.constant dense<0.000000e+00> : vector<512x128xf32>
    %5 = tpu.matmul %3, %4, %cst {dimension_numbers = #tpu.dot_dimension_numbers<[1], [0], [0], [1], [0, 0, 1, 1], [], []>} : vector<512x36xbf16>, vector<36x128xbf16>, vector<512x128xf32> -> vector<512x128xf32>
    %c0_4 = arith.constant 0 : index
    %c0_5 = arith.constant 0 : index
    %6 = vector.load %arg6[%c0_4, %c0_5] : memref<1x128xf32, #tpu.memory_space<vmem>>, vector<1x128xf32>
    %cst_6 = arith.constant dense<0.000000e+00> : vector<128xf32>
    %7 = vector.multi_reduction <add>, %5, %cst_6 [0] : vector<512x128xf32> to vector<128xf32>
    %8 = vector.shape_cast %7 : vector<128xf32> to vector<1x128xf32>
    %9 = arith.addf %6, %8 : vector<1x128xf32>
    %c0_7 = arith.constant 0 : index
    %c0_8 = arith.constant 0 : index
    %10 = vector.load %arg6[%c0_7, %c0_8] : memref<1x128xf32, #tpu.memory_space<vmem>>, vector<1x128xf32>
    tpu.vector_store %arg6[%c0_7, %c0_8], %9 {strides = array<i32>} : memref<1x128xf32, #tpu.memory_space<vmem>>, vector<1x128xf32>,
    %c0_9 = arith.constant 0 : index
    %c0_10 = arith.constant 0 : index
    %11 = vector.load %arg7[%c0_9, %c0_10] : memref<1x128xf32, #tpu.memory_space<vmem>>, vector<1x128xf32>
    %12 = arith.mulf %5, %5 : vector<512x128xf32>
    %cst_11 = arith.constant dense<0.000000e+00> : vector<128xf32>
    %13 = vector.multi_reduction <add>, %12, %cst_11 [0] : vector<512x128xf32> to vector<128xf32>
    %14 = vector.shape_cast %13 : vector<128xf32> to vector<1x128xf32>
    %15 = arith.addf %11, %14 : vector<1x128xf32>
    %c0_12 = arith.constant 0 : index
    %c0_13 = arith.constant 0 : index
    %16 = vector.load %arg7[%c0_12, %c0_13] : memref<1x128xf32, #tpu.memory_space<vmem>>, vector<1x128xf32>
    tpu.vector_store %arg7[%c0_12, %c0_13], %15 {strides = array<i32>} : memref<1x128xf32, #tpu.memory_space<vmem>>, vector<1x128xf32>,
    %c512_i32 = arith.constant 512 : i32
    %17 = arith.muli %arg0, %c512_i32 : i32
    %18 = tpu.assume_multiple %17, 512 : i32
    %19 = arith.index_cast %18 : i32 to index
    %c0_14 = arith.constant 0 : index
    %20 = vector.load %arg5[%19, %c0_14] : memref<512x128xf32, #tpu.memory_space<vmem>>, vector<512x128xf32>
    tpu.vector_store %arg5[%19, %c0_14], %5 {strides = array<i32>} : memref<512x128xf32, #tpu.memory_space<vmem>>, vector<512x128xf32>,
    %c0_i32_15 = arith.constant 0 : i32
    %21 = arith.cmpi eq, %arg0, %c0_i32_15 : i32
    %22 = arith.extui %21 : i1 to i32
    %c0_i32_16 = arith.constant 0 : i32
    %23 = arith.cmpi ne, %22, %c0_i32_16 : i32
    scf.if %23 {
      %c0_17 = arith.constant 0 : index
      %c0_18 = arith.constant 0 : index
      %24 = vector.load %arg6[%c0_17, %c0_18] : memref<1x128xf32, #tpu.memory_space<vmem>>, vector<1x128xf32>
      %cst_19 = arith.constant 0.001953125 : f32
      %25 = vector.broadcast %cst_19 : f32 to vector<1x128xf32>
      %26 = arith.mulf %24, %25 : vector<1x128xf32>
      %c0_20 = arith.constant 0 : index
      %c0_21 = arith.constant 0 : index
      %27 = vector.load %arg7[%c0_20, %c0_21] : memref<1x128xf32, #tpu.memory_space<vmem>>, vector<1x128xf32>
      %cst_22 = arith.constant 0.001953125 : f32
      %28 = vector.broadcast %cst_22 : f32 to vector<1x128xf32>
      %29 = arith.mulf %27, %28 : vector<1x128xf32>
      %30 = arith.mulf %26, %26 : vector<1x128xf32>
      %31 = arith.subf %29, %30 : vector<1x128xf32>
      %cst_23 = arith.constant 0.000000e+00 : f32
      %32 = vector.broadcast %cst_23 : f32 to vector<1x128xf32>
      %33 = arith.maximumf %31, %32 : vector<1x128xf32>
      %cst_24 = arith.constant 9.99999974E-6 : f32
      %34 = vector.broadcast %cst_24 : f32 to vector<1x128xf32>
      %35 = arith.addf %33, %34 : vector<1x128xf32>
      %36 = math.rsqrt %35 : vector<1x128xf32>
      %c0_25 = arith.constant 0 : index
      %c0_26 = arith.constant 0 : index
      %37 = vector.load %arg3[%c0_25, %c0_26] : memref<1x128xf32, #tpu.memory_space<vmem>>, vector<1x128xf32>
      %38 = arith.mulf %36, %37 : vector<1x128xf32>
      %c0_27 = arith.constant 0 : index
      %c0_28 = arith.constant 0 : index
      %39 = vector.load %arg4[%c0_27, %c0_28] : memref<1x128xf32, #tpu.memory_space<vmem>>, vector<1x128xf32>
      %40 = arith.mulf %26, %38 : vector<1x128xf32>
      %41 = arith.subf %39, %40 : vector<1x128xf32>
      %c0_29 = arith.constant 0 : index
      %c0_30 = arith.constant 0 : index
      %42 = vector.load %arg5[%c0_29, %c0_30] : memref<512x128xf32, #tpu.memory_space<vmem>>, vector<512x128xf32>
      %43 = vector.broadcast %38 : vector<1x128xf32> to vector<512x128xf32>
      %44 = arith.mulf %42, %43 : vector<512x128xf32>
      %45 = vector.broadcast %41 : vector<1x128xf32> to vector<512x128xf32>
      %46 = arith.addf %44, %45 : vector<512x128xf32>
      %c0_31 = arith.constant 0 : index
      %c0_32 = arith.constant 0 : index
      %47 = vector.load %arg5[%c0_31, %c0_32] : memref<512x128xf32, #tpu.memory_space<vmem>>, vector<512x128xf32>
      tpu.vector_store %arg5[%c0_31, %c0_32], %46 {strides = array<i32>} : memref<512x128xf32, #tpu.memory_space<vmem>>, vector<512x128xf32>,
    } else {
    }
    return
  }
  func.func @transform_0(%arg0: i32) -> (i32, i32) {
    %c0_i32 = arith.constant 0 : i32
    %c0_i32_0 = arith.constant 0 : i32
    return %arg0, %c0_i32 : i32, i32
  }
  func.func @transform_1(%arg0: i32) -> (i32, i32) {
    %c0_i32 = arith.constant 0 : i32
    %c0_i32_0 = arith.constant 0 : i32
    %c0_i32_1 = arith.constant 0 : i32
    return %c0_i32, %c0_i32_0 : i32, i32
  }
  func.func @transform_2(%arg0: i32) -> (i32, i32) {
    %c0_i32 = arith.constant 0 : i32
    %c0_i32_0 = arith.constant 0 : i32
    %c0_i32_1 = arith.constant 0 : i32
    return %c0_i32, %c0_i32_0 : i32, i32
  }
  func.func @transform_3(%arg0: i32) -> (i32, i32) {
    %c0_i32 = arith.constant 0 : i32
    %c0_i32_0 = arith.constant 0 : i32
    %c0_i32_1 = arith.constant 0 : i32
    return %c0_i32, %c0_i32_0 : i32, i32
  }
  func.func @transform_4(%arg0: i32) -> (i32, i32) {
    %c0_i32 = arith.constant 0 : i32
    %c0_i32_0 = arith.constant 0 : i32
    %c0_i32_1 = arith.constant 0 : i32
    return %c0_i32, %c0_i32_0 : i32, i32
  }
}

</mosaic_0001>

<llo_original>
// kernel: tpu_custom_call.1
$region0: #{tpu_custom_call.1}
  #allocation0 [shape = 'u32[]', space=smem, size = 0x4, offset = 0x4, fixed_abs, tag = 'smem constant byte address 0x4 - core index']
  #allocation1 [shape = 'u32[144,128]{1,0:T(1,128)}', space=vmem, size = 0x12000, scoped, tag = 'internal scratch']
  #allocation2 [shape = 'f32[1,128]{1,0:T(1,128)}', space=vmem, size = 0x200, scoped, tag = 'scratch operand']
  #allocation3 [shape = 'f32[1,128]{1,0:T(1,128)}', space=vmem, size = 0x200, scoped, tag = 'scratch operand']
  %s0 = inlined_call_operand.vmem [shape: bf16[512,36], index: 0, kind: input, shape index: {}]
  %s1 = inlined_call_operand.vmem [shape: bf16[36,128], index: 1, kind: input, shape index: {}]
  %s2 = inlined_call_operand.vmem [shape: f32[1,128], index: 2, kind: input, shape index: {}]
  %s3 = inlined_call_operand.vmem [shape: f32[1,128], index: 3, kind: input, shape index: {}]
  %s4 = inlined_call_operand.hbm [shape: f32[512,128], index: 4, kind: output, shape index: {}]
  %s5 = sld [smem:[#allocation0]]
  $region34: #{tpu_custom_call.1} parent=0
    _
  %s7 = ssub.s32 1, %s5
  %s8 = scalar_select 0, %s7, %s5
  $region1: #{tpu_custom_call.1} parent=0
    #allocation4 [shape = 'u8[262144]{0}', space=vmem, size = 0x40000, scoped, tag = 'output window, operand 0, single buffered']
    #allocation5 [shape = 's32[1]{0}', space=sflag, size = 0x4, scoped, tag = 'scoped memory for tpu_custom_call.1']
    %9 = vsyncpa [#allocation5], 0
    // Predicated region
    $region2: #{tpu_custom_call.1} parent=1 // pred_check
      _
    $region3: #{tpu_custom_call.1} parent=1 // pred_check_branch
      %11 = sbr.rel (0) target = $region5
    $region4: #{tpu_custom_call.1} parent=1 // pred_region
      _
    $region5: #{tpu_custom_call.1} parent=1 // pred_fallthru
      _
    // Predicated region
    $region6: #{tpu_custom_call.1} parent=1 // pred_check
      _
    $region7: #{tpu_custom_call.1} parent=1 // pred_check_branch
      %13 = sbr.rel (0) target = $region9
    $region8: #{tpu_custom_call.1} parent=1 // pred_region
      _
    $region9: #{tpu_custom_call.1} parent=1 // pred_fallthru
      _
    // Predicated region
    $region10: #{tpu_custom_call.1} parent=1 // pred_check
      _
    $region11: #{tpu_custom_call.1} parent=1 // pred_check_branch
      %15 = sbr.rel (0) target = $region13
    $region12: #{tpu_custom_call.1} parent=1 // pred_region
      _
    $region13: #{tpu_custom_call.1} parent=1 // pred_fallthru
      _
    // Predicated region
    $region14: #{tpu_custom_call.1} parent=1 // pred_check
      _
    $region15: #{tpu_custom_call.1} parent=1 // pred_check_branch
      %17 = sbr.rel (0) target = $region17
    $region16: #{tpu_custom_call.1} parent=1 // pred_region
      _
    $region17: #{tpu_custom_call.1} parent=1 // pred_fallthru
      _
    %p19 = scmp.eq.s32.totalorder 0, 0
    // Predicated region
    $region18: #{tpu_custom_call.1} parent=1 // pred_check
      %p20 = pneg %p19
    $region19: #{tpu_custom_call.1} parent=1 // pred_check_branch
      %22 = sbr.rel (%p20) target = $region21
    $region20: #{tpu_custom_call.1} parent=1 // pred_region
      %23 = vst [vmem:[#allocation2] sm:$0x1] 0.0
      %24 = vst [vmem:[#allocation3] sm:$0x1] 0.0
    $region21: #{tpu_custom_call.1} parent=1 // pred_fallthru
      _
    %v25 = vld [vmem:[%s0] sm:$0xf]
    %v26 = vld [vmem:[%s0 + $0x4] sm:$0xf]
    %v27 = vld [vmem:[%s0 + $0x8] sm:$0xf]
    %v28 = vld [vmem:[%s0 + $0xc] sm:$0xf]
    %v29 = vld [vmem:[%s0 + $0x10] sm:$0xf]
    %v30 = vld [vmem:[%s0 + $0x14] sm:$0xf]
    %v31 = vld [vmem:[%s0 + $0x18] sm:$0xf]
    %v32 = vld [vmem:[%s0 + $0x1c] sm:$0xf]
    %v33 = vld [vmem:[%s0 + $0x20] sm:$0xf]
    %v34 = vld [vmem:[%s0 + $0x24] sm:$0xf]
    %v35 = vld [vmem:[%s0 + $0x28] sm:$0xf]
    %v36 = vld [vmem:[%s0 + $0x2c] sm:$0xf]
    %v37 = vld [vmem:[%s0 + $0x30] sm:$0xf]
    %v38 = vld [vmem:[%s0 + $0x34] sm:$0xf]
    %v39 = vld [vmem:[%s0 + $0x38] sm:$0xf]
    %v40 = vld [vmem:[%s0 + $0x3c] sm:$0xf]
    %v41 = vld [vmem:[%s0 + $0x40] sm:$0xf]
    %v42 = vld [vmem:[%s0 + $0x44] sm:$0xf]
    %v43 = vld [vmem:[%s0 + $0x48] sm:$0xf]
    %v44 = vld [vmem:[%s0 + $0x4c] sm:$0xf]
    %v45 = vld [vmem:[%s0 + $0x50] sm:$0xf]
    %v46 = vld [vmem:[%s0 + $0x54] sm:$0xf]
    %v47 = vld [vmem:[%s0 + $0x58] sm:$0xf]
    %v48 = vld [vmem:[%s0 + $0x5c] sm:$0xf]
    %v49 = vld [vmem:[%s0 + $0x60] sm:$0xf]
    %v50 = vld [vmem:[%s0 + $0x64] sm:$0xf]
    %v51 = vld [vmem:[%s0 + $0x68] sm:$0xf]
    %v52 = vld [vmem:[%s0 + $0x6c] sm:$0xf]
    %v53 = vld [vmem:[%s0 + $0x70] sm:$0xf]
    %v54 = vld [vmem:[%s0 + $0x74] sm:$0xf]
    %v55 = vld [vmem:[%s0 + $0x78] sm:$0xf]
    %v56 = vld [vmem:[%s0 + $0x7c] sm:$0xf]
    %v57 = vld [vmem:[%s0 + $0x80] sm:$0xf]
    %v58 = vld [vmem:[%s0 + $0x84] sm:$0xf]
    %v59 = vld [vmem:[%s0 + $0x88] sm:$0xf]
    %v60 = vld [vmem:[%s0 + $0x8c] sm:$0xf]
    %v61 = vld [vmem:[%s0 + $0x90] sm:$0xf]
    %v62 = vld [vmem:[%s0 + $0x94] sm:$0xf]
    %v63 = vld [vmem:[%s0 + $0x98] sm:$0xf]
    %v64 = vld [vmem:[%s0 + $0x9c] sm:$0xf]
    %v65 = vld [vmem:[%s0 + $0xa0] sm:$0xf]
    %v66 = vld [vmem:[%s0 + $0xa4] sm:$0xf]
    %v67 = vld [vmem:[%s0 + $0xa8] sm:$0xf]
    %v68 = vld [vmem:[%s0 + $0xac] sm:$0xf]
    %v69 = vld [vmem:[%s0 + $0xb0] sm:$0xf]
    %v70 = vld [vmem:[%s0 + $0xb4] sm:$0xf]
    %v71 = vld [vmem:[%s0 + $0xb8] sm:$0xf]
    %v72 = vld [vmem:[%s0 + $0xbc] sm:$0xf]
    %v73 = vld [vmem:[%s0 + $0xc0] sm:$0xf]
    %v74 = vld [vmem:[%s0 + $0xc4] sm:$0xf]
    %v75 = vld [vmem:[%s0 + $0xc8] sm:$0xf]
    %v76 = vld [vmem:[%s0 + $0xcc] sm:$0xf]
    %v77 = vld [vmem:[%s0 + $0xd0] sm:$0xf]
    %v78 = vld [vmem:[%s0 + $0xd4] sm:$0xf]
    %v79 = vld [vmem:[%s0 + $0xd8] sm:$0xf]
    %v80 = vld [vmem:[%s0 + $0xdc] sm:$0xf]
    %v81 = vld [vmem:[%s0 + $0xe0] sm:$0xf]
    %v82 = vld [vmem:[%s0 + $0xe4] sm:$0xf]
    %v83 = vld [vmem:[%s0 + $0xe8] sm:$0xf]
    %v84 = vld [vmem:[%s0 + $0xec] sm:$0xf]
    %v85 = vld [vmem:[%s0 + $0xf0] sm:$0xf]
    %v86 = vld [vmem:[%s0 + $0xf4] sm:$0xf]
    %v87 = vld [vmem:[%s0 + $0xf8] sm:$0xf]
    %v88 = vld [vmem:[%s0 + $0xfc] sm:$0xf]
    %v89 = vld [vmem:[%s1] sm:$0xf]
    %v90 = vld [vmem:[%s1 + $0x4] sm:$0xf]
    %v91 = vld [vmem:[%s1 + $0x8] sm:$0xf]
    %v92 = vld [vmem:[%s1 + $0xc] sm:$0xf]
    %v93 = vld [vmem:[%s1 + $0x10] sm:$0x3]
    %v158 = vunpack.c.l.b16 %v25
    %v159 = vunpack.c.l.b16 %v26
    %v160 = vunpack.c.l.b16 %v27
    %v161 = vunpack.c.l.b16 %v28
    %v162 = vunpack.c.l.b16 %v29
    %v163 = vunpack.c.l.b16 %v30
    %v164 = vunpack.c.l.b16 %v31
    %v165 = vunpack.c.l.b16 %v32
    %v166 = vunpack.c.l.b16 %v33
    %v167 = vunpack.c.l.b16 %v34
    %v168 = vunpack.c.l.b16 %v35
    %v169 = vunpack.c.l.b16 %v36
    %v170 = vunpack.c.l.b16 %v37
    %v171 = vunpack.c.l.b16 %v38
    %v172 = vunpack.c.l.b16 %v39
    %v173 = vunpack.c.l.b16 %v40
    %v174 = vunpack.c.l.b16 %v41
    %v175 = vunpack.c.l.b16 %v42
    %v176 = vunpack.c.l.b16 %v43
    %v177 = vunpack.c.l.b16 %v44
    %v178 = vunpack.c.l.b16 %v45
    %v179 = vunpack.c.l.b16 %v46
    %v180 = vunpack.c.l.b16 %v47
    %v181 = vunpack.c.l.b16 %v48
    %v182 = vunpack.c.l.b16 %v49
    %v183 = vunpack.c.l.b16 %v50
    %v184 = vunpack.c.l.b16 %v51
    %v185 = vunpack.c.l.b16 %v52
    %v186 = vunpack.c.l.b16 %v53
    %v187 = vunpack.c.l.b16 %v54
    %v188 = vunpack.c.l.b16 %v55
    %v189 = vunpack.c.l.b16 %v56
    %v190 = vunpack.c.l.b16 %v57
    %v191 = vunpack.c.l.b16 %v58
    %v192 = vunpack.c.l.b16 %v59
    %v193 = vunpack.c.l.b16 %v60
    %v194 = vunpack.c.l.b16 %v61
    %v195 = vunpack.c.l.b16 %v62
    %v196 = vunpack.c.l.b16 %v63
    %v197 = vunpack.c.l.b16 %v64
    %v198 = vunpack.c.l.b16 %v65
    %v199 = vunpack.c.l.b16 %v66
    %v200 = vunpack.c.l.b16 %v67
    %v201 = vunpack.c.l.b16 %v68
    %v202 = vunpack.c.l.b16 %v69
    %v203 = vunpack.c.l.b16 %v70
    %v204 = vunpack.c.l.b16 %v71
    %v205 = vunpack.c.l.b16 %v72
    %v206 = vunpack.c.l.b16 %v73
    %v207 = vunpack.c.l.b16 %v74
    %v208 = vunpack.c.l.b16 %v75
    %v209 = vunpack.c.l.b16 %v76
    %v210 = vunpack.c.l.b16 %v77
    %v211 = vunpack.c.l.b16 %v78
    %v212 = vunpack.c.l.b16 %v79
    %v213 = vunpack.c.l.b16 %v80
    %v214 = vunpack.c.l.b16 %v81
    %v215 = vunpack.c.l.b16 %v82
    %v216 = vunpack.c.l.b16 %v83
    %v217 = vunpack.c.l.b16 %v84
    %v218 = vunpack.c.l.b16 %v85
    %v219 = vunpack.c.l.b16 %v86
    %v220 = vunpack.c.l.b16 %v87
    %v221 = vunpack.c.l.b16 %v88
    %v222 = vpack.c.b16 %v159, %v158
    %v223 = vpack.c.b16 %v161, %v160
    %v224 = vpack.c.b16 %v163, %v162
    %v225 = vpack.c.b16 %v165, %v164
    %v226 = vpack.c.b16 %v167, %v166
    %v227 = vpack.c.b16 %v169, %v168
    %v228 = vpack.c.b16 %v171, %v170
    %v229 = vpack.c.b16 %v173, %v172
    %v230 = vpack.c.b16 %v175, %v174
    %v231 = vpack.c.b16 %v177, %v176
    %v232 = vpack.c.b16 %v179, %v178
    %v233 = vpack.c.b16 %v181, %v180
    %v234 = vpack.c.b16 %v183, %v182
    %v235 = vpack.c.b16 %v185, %v184
    %v236 = vpack.c.b16 %v187, %v186
    %v237 = vpack.c.b16 %v189, %v188
    %v238 = vpack.c.b16 %v191, %v190
    %v239 = vpack.c.b16 %v193, %v192
    %v240 = vpack.c.b16 %v195, %v194
    %v241 = vpack.c.b16 %v197, %v196
    %v242 = vpack.c.b16 %v199, %v198
    %v243 = vpack.c.b16 %v201, %v200
    %v244 = vpack.c.b16 %v203, %v202
    %v245 = vpack.c.b16 %v205, %v204
    %v246 = vpack.c.b16 %v207, %v206
    %v247 = vpack.c.b16 %v209, %v208
    %v248 = vpack.c.b16 %v211, %v210
    %v249 = vpack.c.b16 %v213, %v212
    %v250 = vpack.c.b16 %v215, %v214
    %v251 = vpack.c.b16 %v217, %v216
    %v252 = vpack.c.b16 %v219, %v218
    %v253 = vpack.c.b16 %v221, %v220
    %v259 = vunpack.c.l.b16 %v89
    %v260 = vunpack.c.l.b16 %v90
    %v261 = vunpack.c.l.b16 %v91
    %v262 = vunpack.c.l.b16 %v92
    %v263 = vunpack.c.l.b16 %v93
    %v264 = vpack.c.b16 %v260, %v259
    %v265 = vpack.c.b16 %v262, %v261
    %v266 = vpack.c.b16 %v263, %v263
    %vm269 = vcmask 293888
    %v271 = vsel %vm269, %v222, 0
    %v274 = vsel %vm269, %v223, 0
    %v277 = vsel %vm269, %v224, 0
    %v280 = vsel %vm269, %v225, 0
    %v283 = vsel %vm269, %v226, 0
    %v286 = vsel %vm269, %v227, 0
    %v289 = vsel %vm269, %v228, 0
    %v292 = vsel %vm269, %v229, 0
    %v295 = vsel %vm269, %v230, 0
    %v298 = vsel %vm269, %v231, 0
    %v301 = vsel %vm269, %v232, 0
    %v304 = vsel %vm269, %v233, 0
    %v307 = vsel %vm269, %v234, 0
    %v310 = vsel %vm269, %v235, 0
    %v313 = vsel %vm269, %v236, 0
    %v316 = vsel %vm269, %v237, 0
    %v319 = vsel %vm269, %v238, 0
    %v322 = vsel %vm269, %v239, 0
    %v325 = vsel %vm269, %v240, 0
    %v328 = vsel %vm269, %v241, 0
    %v331 = vsel %vm269, %v242, 0
    %v334 = vsel %vm269, %v243, 0
    %v337 = vsel %vm269, %v244, 0
    %v340 = vsel %vm269, %v245, 0
    %v343 = vsel %vm269, %v246, 0
    %v346 = vsel %vm269, %v247, 0
    %v349 = vsel %vm269, %v248, 0
    %v352 = vsel %vm269, %v249, 0
    %v355 = vsel %vm269, %v250, 0
    %v358 = vsel %vm269, %v251, 0
    %v361 = vsel %vm269, %v252, 0
    %v364 = vsel %vm269, %v253, 0
    %vm366 = vcmask 1041408
    %v368 = vsel %vm366, %v266, 0
    %370 = vmatprep.subr.bf16.mxu0 0
    %371 = vmatpush1.bf16.msra.mxu0 %v264
    %372 = vmatprep.subr.bf16.mxu0 0
    %373 = vmatpush1.bf16.msra.mxu0 %v265
    %374 = vmatprep.subr.bf16.mxu0 0
    %375 = vmatpush1.bf16.msra.mxu0 %v368
    %376 = vmatprep.subr.bf16.mxu0 0
    %377 = vmatpush1.bf16.msra.mxu0 0
    %378 = vmatprep.subr.bf16.mxu0 0
    %379 = vmatpush1.bf16.msra.mxu0 0
    %380 = vmatprep.subr.bf16.mxu0 0
    %381 = vmatpush1.bf16.msra.mxu0 0
    %382 = vmatprep.subr.bf16.mxu0 0
    %383 = vmatpush1.bf16.msra.mxu0 0
    %384 = vmatprep.subr.bf16.mxu0 0
    %385 = vmatpush1.bf16.msra.mxu0 0
    %386 = vmatprep.subr.bf16.mxu0 0
    %387 = vmatpush1.bf16.msra.mxu0 0
    %388 = vmatprep.subr.bf16.mxu0 0
    %389 = vmatpush1.bf16.msra.mxu0 0
    %390 = vmatprep.subr.bf16.mxu0 0
    %391 = vmatpush1.bf16.msra.mxu0 0
    %392 = vmatprep.subr.bf16.mxu0 0
    %393 = vmatpush1.bf16.msra.mxu0 0
    %394 = vmatprep.subr.bf16.mxu0 0
    %395 = vmatpush1.bf16.msra.mxu0 0
    %396 = vmatprep.subr.bf16.mxu0 0
    %397 = vmatpush1.bf16.msra.mxu0 0
    %398 = vmatprep.subr.bf16.mxu0 0
    %399 = vmatpush1.bf16.msra.mxu0 0
    %400 = vmatprep.subr.bf16.mxu0 0
    %401 = vmatpush1.bf16.msra.mxu0 0
    %402 = vmatprep.mubr.bf16.mxu0 0
    %403 = vmatmul.mubr.bf16.gmra.mrb[0].mxu0 %v271
    %v404 = vpop.f32.mrb[0].mxu0
    %v405 = vadd.f32 0.0, %v404
    %v406 = vpop.f32.mrb[0].mxu0
    %v407 = vpop.f32.mrb[0].mxu0
    %v408 = vadd.f32 0.0, %v407
    %v409 = vpop.f32.mrb[0].mxu0
    %410 = vmatprep.mubr.bf16.mxu0 0
    %411 = vmatmul.mubr.bf16.gmra.mrb[0].mxu0 %v274
    %v412 = vpop.f32.mrb[0].mxu0
    %v413 = vadd.f32 0.0, %v412
    %v414 = vpop.f32.mrb[0].mxu0
    %v415 = vpop.f32.mrb[0].mxu0
    %v416 = vadd.f32 0.0, %v415
    %v417 = vpop.f32.mrb[0].mxu0
    %418 = vmatprep.mubr.bf16.mxu0 0
    %419 = vmatmul.mubr.bf16.gmra.mrb[0].mxu0 %v277
    %v420 = vpop.f32.mrb[0].mxu0
    %v421 = vadd.f32 0.0, %v420
    %v422 = vpop.f32.mrb[0].mxu0
    %v423 = vpop.f32.mrb[0].mxu0
    %v424 = vadd.f32 0.0, %v423
    %v425 = vpop.f32.mrb[0].mxu0
    %426 = vmatprep.mubr.bf16.mxu0 0
    %427 = vmatmul.mubr.bf16.gmra.mrb[0].mxu0 %v280
    %v428 = vpop.f32.mrb[0].mxu0
    %v429 = vadd.f32 0.0, %v428
    %v430 = vpop.f32.mrb[0].mxu0
    %v431 = vpop.f32.mrb[0].mxu0
    %v432 = vadd.f32 0.0, %v431
    %v433 = vpop.f32.mrb[0].mxu0
    %434 = vmatprep.mubr.bf16.mxu0 0
    %435 = vmatmul.mubr.bf16.gmra.mrb[0].mxu0 %v283
    %v436 = vpop.f32.mrb[0].mxu0
    %v437 = vadd.f32 0.0, %v436
    %v438 = vpop.f32.mrb[0].mxu0
    %v439 = vpop.f32.mrb[0].mxu0
    %v440 = vadd.f32 0.0, %v439
    %v441 = vpop.f32.mrb[0].mxu0
    %442 = vmatprep.mubr.bf16.mxu0 0
    %443 = vmatmul.mubr.bf16.gmra.mrb[0].mxu0 %v286
    %v444 = vpop.f32.mrb[0].mxu0
    %v445 = vadd.f32 0.0, %v444
    %v446 = vpop.f32.mrb[0].mxu0
    %v447 = vpop.f32.mrb[0].mxu0
    %v448 = vadd.f32 0.0, %v447
    %v449 = vpop.f32.mrb[0].mxu0
    %450 = vmatprep.mubr.bf16.mxu0 0
    %451 = vmatmul.mubr.bf16.gmra.mrb[0].mxu0 %v289
    %v452 = vpop.f32.mrb[0].mxu0
    %v453 = vadd.f32 0.0, %v452
    %v454 = vpop.f32.mrb[0].mxu0
    %v455 = vpop.f32.mrb[0].mxu0
    %v456 = vadd.f32 0.0, %v455
    %v457 = vpop.f32.mrb[0].mxu0
    %458 = vmatprep.mubr.bf16.mxu0 0
    %459 = vmatmul.mubr.bf16.gmra.mrb[0].mxu0 %v292
    %v460 = vpop.f32.mrb[0].mxu0
    %v461 = vadd.f32 0.0, %v460
    %v462 = vpop.f32.mrb[0].mxu0
    %v463 = vpop.f32.mrb[0].mxu0
    %v464 = vadd.f32 0.0, %v463
    %v465 = vpop.f32.mrb[0].mxu0
    %466 = vmatprep.mubr.bf16.mxu0 0
    %467 = vmatmul.mubr.bf16.gmra.mrb[0].mxu0 %v295
    %v468 = vpop.f32.mrb[0].mxu0
    %v469 = vadd.f32 0.0, %v468
    %v470 = vpop.f32.mrb[0].mxu0
    %v471 = vpop.f32.mrb[0].mxu0
    %v472 = vadd.f32 0.0, %v471
    %v473 = vpop.f32.mrb[0].mxu0
    %474 = vmatprep.mubr.bf16.mxu0 0
    %475 = vmatmul.mubr.bf16.gmra.mrb[0].mxu0 %v298
    %v476 = vpop.f32.mrb[0].mxu0
    %v477 = vadd.f32 0.0, %v476
    %v478 = vpop.f32.mrb[0].mxu0
    %v479 = vpop.f32.mrb[0].mxu0
    %v480 = vadd.f32 0.0, %v479
    %v481 = vpop.f32.mrb[0].mxu0
    %482 = vmatprep.mubr.bf16.mxu0 0
    %483 = vmatmul.mubr.bf16.gmra.mrb[0].mxu0 %v301
    %v484 = vpop.f32.mrb[0].mxu0
    %v485 = vadd.f32 0.0, %v484
    %v486 = vpop.f32.mrb[0].mxu0
    %v487 = vpop.f32.mrb[0].mxu0
    %v488 = vadd.f32 0.0, %v487
    %v489 = vpop.f32.mrb[0].mxu0
    %490 = vmatprep.mubr.bf16.mxu0 0
    %491 = vmatmul.mubr.bf16.gmra.mrb[0].mxu0 %v304
    %v492 = vpop.f32.mrb[0].mxu0
    %v493 = vadd.f32 0.0, %v492
    %v494 = vpop.f32.mrb[0].mxu0
    %v495 = vpop.f32.mrb[0].mxu0
    %v496 = vadd.f32 0.0, %v495
    %v497 = vpop.f32.mrb[0].mxu0
    %498 = vmatprep.mubr.bf16.mxu0 0
    %499 = vmatmul.mubr.bf16.gmra.mrb[0].mxu0 %v307
    %v500 = vpop.f32.mrb[0].mxu0
    %v501 = vadd.f32 0.0, %v500
    %v502 = vpop.f32.mrb[0].mxu0
    %v503 = vpop.f32.mrb[0].mxu0
    %v504 = vadd.f32 0.0, %v503
    %v505 = vpop.f32.mrb[0].mxu0
    %506 = vmatprep.mubr.bf16.mxu0 0
    %507 = vmatmul.mubr.bf16.gmra.mrb[0].mxu0 %v310
    %v508 = vpop.f32.mrb[0].mxu0
    %v509 = vadd.f32 0.0, %v508
    %v510 = vpop.f32.mrb[0].mxu0
    %v511 = vpop.f32.mrb[0].mxu0
    %v512 = vadd.f32 0.0, %v511
    %v513 = vpop.f32.mrb[0].mxu0
    %514 = vmatprep.mubr.bf16.mxu0 0
    %515 = vmatmul.mubr.bf16.gmra.mrb[0].mxu0 %v313
    %v516 = vpop.f32.mrb[0].mxu0
    %v517 = vadd.f32 0.0, %v516
    %v518 = vpop.f32.mrb[0].mxu0
    %v519 = vpop.f32.mrb[0].mxu0
    %v520 = vadd.f32 0.0, %v519
    %v521 = vpop.f32.mrb[0].mxu0
    %522 = vmatprep.mubr.bf16.mxu0 0
    %523 = vmatmul.mubr.bf16.gmra.mrb[0].mxu0 %v316
    %v524 = vpop.f32.mrb[0].mxu0
    %v525 = vadd.f32 0.0, %v524
    %v526 = vpop.f32.mrb[0].mxu0
    %v527 = vpop.f32.mrb[0].mxu0
    %v528 = vadd.f32 0.0, %v527
    %v529 = vpop.f32.mrb[0].mxu0
    %530 = vmatprep.mubr.bf16.mxu0 0
    %531 = vmatmul.mubr.bf16.gmra.mrb[0].mxu0 %v319
    %v532 = vpop.f32.mrb[0].mxu0
    %v533 = vadd.f32 0.0, %v532
    %v534 = vpop.f32.mrb[0].mxu0
    %v535 = vpop.f32.mrb[0].mxu0
    %v536 = vadd.f32 0.0, %v535
    %v537 = vpop.f32.mrb[0].mxu0
    %538 = vmatprep.mubr.bf16.mxu0 0
    %539 = vmatmul.mubr.bf16.gmra.mrb[0].mxu0 %v322
    %v540 = vpop.f32.mrb[0].mxu0
    %v541 = vadd.f32 0.0, %v540
    %v542 = vpop.f32.mrb[0].mxu0
    %v543 = vpop.f32.mrb[0].mxu0
    %v544 = vadd.f32 0.0, %v543
    %v545 = vpop.f32.mrb[0].mxu0
    %546 = vmatprep.mubr.bf16.mxu0 0
    %547 = vmatmul.mubr.bf16.gmra.mrb[0].mxu0 %v325
    %v548 = vpop.f32.mrb[0].mxu0
    %v549 = vadd.f32 0.0, %v548
    %v550 = vpop.f32.mrb[0].mxu0
    %v551 = vpop.f32.mrb[0].mxu0
    %v552 = vadd.f32 0.0, %v551
    %v553 = vpop.f32.mrb[0].mxu0
    %554 = vmatprep.mubr.bf16.mxu0 0
    %555 = vmatmul.mubr.bf16.gmra.mrb[0].mxu0 %v328
    %v556 = vpop.f32.mrb[0].mxu0
    %v557 = vadd.f32 0.0, %v556
    %v558 = vpop.f32.mrb[0].mxu0
    %v559 = vpop.f32.mrb[0].mxu0
    %v560 = vadd.f32 0.0, %v559
    %v561 = vpop.f32.mrb[0].mxu0
    %562 = vmatprep.mubr.bf16.mxu0 0
    %563 = vmatmul.mubr.bf16.gmra.mrb[0].mxu0 %v331
    %v564 = vpop.f32.mrb[0].mxu0
    %v565 = vadd.f32 0.0, %v564
    %v566 = vpop.f32.mrb[0].mxu0
    %v567 = vpop.f32.mrb[0].mxu0
    %v568 = vadd.f32 0.0, %v567
    %v569 = vpop.f32.mrb[0].mxu0
    %570 = vmatprep.mubr.bf16.mxu0 0
    %571 = vmatmul.mubr.bf16.gmra.mrb[0].mxu0 %v334
    %v572 = vpop.f32.mrb[0].mxu0
    %v573 = vadd.f32 0.0, %v572
    %v574 = vpop.f32.mrb[0].mxu0
    %v575 = vpop.f32.mrb[0].mxu0
    %v576 = vadd.f32 0.0, %v575
    %v577 = vpop.f32.mrb[0].mxu0
    %578 = vmatprep.mubr.bf16.mxu0 0
    %579 = vmatmul.mubr.bf16.gmra.mrb[0].mxu0 %v337
    %v580 = vpop.f32.mrb[0].mxu0
    %v581 = vadd.f32 0.0, %v580
    %v582 = vpop.f32.mrb[0].mxu0
    %v583 = vpop.f32.mrb[0].mxu0
    %v584 = vadd.f32 0.0, %v583
    %v585 = vpop.f32.mrb[0].mxu0
    %586 = vmatprep.mubr.bf16.mxu0 0
    %587 = vmatmul.mubr.bf16.gmra.mrb[0].mxu0 %v340
    %v588 = vpop.f32.mrb[0].mxu0
    %v589 = vadd.f32 0.0, %v588
    %v590 = vpop.f32.mrb[0].mxu0
    %v591 = vpop.f32.mrb[0].mxu0
    %v592 = vadd.f32 0.0, %v591
    %v593 = vpop.f32.mrb[0].mxu0
    %594 = vmatprep.mubr.bf16.mxu0 0
    %595 = vmatmul.mubr.bf16.gmra.mrb[0].mxu0 %v343
    %v596 = vpop.f32.mrb[0].mxu0
    %v597 = vadd.f32 0.0, %v596
    %v598 = vpop.f32.mrb[0].mxu0
    %v599 = vpop.f32.mrb[0].mxu0
    %v600 = vadd.f32 0.0, %v599
    %v601 = vpop.f32.mrb[0].mxu0
    %602 = vmatprep.mubr.bf16.mxu0 0
    %603 = vmatmul.mubr.bf16.gmra.mrb[0].mxu0 %v346
    %v604 = vpop.f32.mrb[0].mxu0
    %v605 = vadd.f32 0.0, %v604
    %v606 = vpop.f32.mrb[0].mxu0
    %v607 = vpop.f32.mrb[0].mxu0
    %v608 = vadd.f32 0.0, %v607
    %v609 = vpop.f32.mrb[0].mxu0
    %610 = vmatprep.mubr.bf16.mxu0 0
    %611 = vmatmul.mubr.bf16.gmra.mrb[0].mxu0 %v349
    %v612 = vpop.f32.mrb[0].mxu0
    %v613 = vadd.f32 0.0, %v612
    %v614 = vpop.f32.mrb[0].mxu0
    %v615 = vpop.f32.mrb[0].mxu0
    %v616 = vadd.f32 0.0, %v615
    %v617 = vpop.f32.mrb[0].mxu0
    %618 = vmatprep.mubr.bf16.mxu0 0
    %619 = vmatmul.mubr.bf16.gmra.mrb[0].mxu0 %v352
    %v620 = vpop.f32.mrb[0].mxu0
    %v621 = vadd.f32 0.0, %v620
    %v622 = vpop.f32.mrb[0].mxu0
    %v623 = vpop.f32.mrb[0].mxu0
    %v624 = vadd.f32 0.0, %v623
    %v625 = vpop.f32.mrb[0].mxu0
    %626 = vmatprep.mubr.bf16.mxu0 0
    %627 = vmatmul.mubr.bf16.gmra.mrb[0].mxu0 %v355
    %v628 = vpop.f32.mrb[0].mxu0
    %v629 = vadd.f32 0.0, %v628
    %v630 = vpop.f32.mrb[0].mxu0
    %v631 = vpop.f32.mrb[0].mxu0
    %v632 = vadd.f32 0.0, %v631
    %v633 = vpop.f32.mrb[0].mxu0
    %634 = vmatprep.mubr.bf16.mxu0 0
    %635 = vmatmul.mubr.bf16.gmra.mrb[0].mxu0 %v358
    %v636 = vpop.f32.mrb[0].mxu0
    %v637 = vadd.f32 0.0, %v636
    %v638 = vpop.f32.mrb[0].mxu0
    %v639 = vpop.f32.mrb[0].mxu0
    %v640 = vadd.f32 0.0, %v639
    %v641 = vpop.f32.mrb[0].mxu0
    %642 = vmatprep.mubr.bf16.mxu0 0
    %643 = vmatmul.mubr.bf16.gmra.mrb[0].mxu0 %v361
    %v644 = vpop.f32.mrb[0].mxu0
    %v645 = vadd.f32 0.0, %v644
    %v646 = vpop.f32.mrb[0].mxu0
    %v647 = vpop.f32.mrb[0].mxu0
    %v648 = vadd.f32 0.0, %v647
    %v649 = vpop.f32.mrb[0].mxu0
    %650 = vmatprep.mubr.bf16.mxu0 0
    %651 = vmatmul.mubr.bf16.gmra.mrb[0].mxu0 %v364
    %v652 = vpop.f32.mrb[0].mxu0
    %v653 = vadd.f32 0.0, %v652
    %v654 = vpop.f32.mrb[0].mxu0
    %v655 = vpop.f32.mrb[0].mxu0
    %v656 = vadd.f32 0.0, %v655
    %v657 = vpop.f32.mrb[0].mxu0
    %658 = vdwg.mxu0
    %v659 = vld [vmem:[#allocation2] sm:$0x1]
    %v660 = vadd.f32 %v405, %v408
    %v661 = vadd.f32 %v660, %v413
    %v662 = vadd.f32 %v661, %v416
    %v663 = vadd.f32 %v662, %v421
    %v664 = vadd.f32 %v663, %v424
    %v665 = vadd.f32 %v664, %v429
    %v666 = vadd.f32 %v665, %v432
    %v667 = vadd.f32 %v666, %v437
    %v668 = vadd.f32 %v667, %v440
    %v669 = vadd.f32 %v668, %v445
    %v670 = vadd.f32 %v669, %v448
    %v671 = vadd.f32 %v670, %v453
    %v672 = vadd.f32 %v671, %v456
    %v673 = vadd.f32 %v672, %v461
    %v674 = vadd.f32 %v673, %v464
    %v675 = vadd.f32 %v674, %v469
    %v676 = vadd.f32 %v675, %v472
    %v677 = vadd.f32 %v676, %v477
    %v678 = vadd.f32 %v677, %v480
    %v679 = vadd.f32 %v678, %v485
    %v680 = vadd.f32 %v679, %v488
    %v681 = vadd.f32 %v680, %v493
    %v682 = vadd.f32 %v681, %v496
    %v683 = vadd.f32 %v682, %v501
    %v684 = vadd.f32 %v683, %v504
    %v685 = vadd.f32 %v684, %v509
    %v686 = vadd.f32 %v685, %v512
    %v687 = vadd.f32 %v686, %v517
    %v688 = vadd.f32 %v687, %v520
    %v689 = vadd.f32 %v688, %v525
    %v690 = vadd.f32 %v689, %v528
    %v691 = vadd.f32 %v690, %v533
    %v692 = vadd.f32 %v691, %v536
    %v693 = vadd.f32 %v692, %v541
    %v694 = vadd.f32 %v693, %v544
    %v695 = vadd.f32 %v694, %v549
    %v696 = vadd.f32 %v695, %v552
    %v697 = vadd.f32 %v696, %v557
    %v698 = vadd.f32 %v697, %v560
    %v699 = vadd.f32 %v698, %v565
    %v700 = vadd.f32 %v699, %v568
    %v701 = vadd.f32 %v700, %v573
    %v702 = vadd.f32 %v701, %v576
    %v703 = vadd.f32 %v702, %v581
    %v704 = vadd.f32 %v703, %v584
    %v705 = vadd.f32 %v704, %v589
    %v706 = vadd.f32 %v705, %v592
    %v707 = vadd.f32 %v706, %v597
    %v708 = vadd.f32 %v707, %v600
    %v709 = vadd.f32 %v708, %v605
    %v710 = vadd.f32 %v709, %v608
    %v711 = vadd.f32 %v710, %v613
    %v712 = vadd.f32 %v711, %v616
    %v713 = vadd.f32 %v712, %v621
    %v714 = vadd.f32 %v713, %v624
    %v715 = vadd.f32 %v714, %v629
    %v716 = vadd.f32 %v715, %v632
    %v717 = vadd.f32 %v716, %v637
    %v718 = vadd.f32 %v717, %v640
    %v719 = vadd.f32 %v718, %v645
    %v720 = vadd.f32 %v719, %v648
    %v721 = vadd.f32 %v720, %v653
    %v722 = vadd.f32 %v721, %v656
    %v723 = vrot.slane %v722, 4
    %v724 = vadd.f32 %v722, %v723
    %v725 = vrot.slane %v724, 2
    %v726 = vadd.f32 %v724, %v725
    %v727 = vrot.slane %v726, 1
    %v728 = vadd.f32 %v726, %v727
    %v729 = vadd.f32 %v659, %v728
    %730 = vst [vmem:[#allocation2] sm:$0x1] %v729
    %v731 = vld [vmem:[#allocation3] sm:$0x1]
    %v732 = vmul.f32 %v405, %v405
    %v733 = vmul.f32 %v408, %v408
    %v734 = vmul.f32 %v413, %v413
    %v735 = vmul.f32 %v416, %v416
    %v736 = vmul.f32 %v421, %v421
    %v737 = vmul.f32 %v424, %v424
    %v738 = vmul.f32 %v429, %v429
    %v739 = vmul.f32 %v432, %v432
    %v740 = vmul.f32 %v437, %v437
    %v741 = vmul.f32 %v440, %v440
    %v742 = vmul.f32 %v445, %v445
    %v743 = vmul.f32 %v448, %v448
    %v744 = vmul.f32 %v453, %v453
    %v745 = vmul.f32 %v456, %v456
    %v746 = vmul.f32 %v461, %v461
    %v747 = vmul.f32 %v464, %v464
    %v748 = vmul.f32 %v469, %v469
    %v749 = vmul.f32 %v472, %v472
    %v750 = vmul.f32 %v477, %v477
    %v751 = vmul.f32 %v480, %v480
    %v752 = vmul.f32 %v485, %v485
    %v753 = vmul.f32 %v488, %v488
    %v754 = vmul.f32 %v493, %v493
    %v755 = vmul.f32 %v496, %v496
    %v756 = vmul.f32 %v501, %v501
    %v757 = vmul.f32 %v504, %v504
    %v758 = vmul.f32 %v509, %v509
    %v759 = vmul.f32 %v512, %v512
    %v760 = vmul.f32 %v517, %v517
    %v761 = vmul.f32 %v520, %v520
    %v762 = vmul.f32 %v525, %v525
    %v763 = vmul.f32 %v528, %v528
    %v764 = vmul.f32 %v533, %v533
    %v765 = vmul.f32 %v536, %v536
    %v766 = vmul.f32 %v541, %v541
    %v767 = vmul.f32 %v544, %v544
    %v768 = vmul.f32 %v549, %v549
    %v769 = vmul.f32 %v552, %v552
    %v770 = vmul.f32 %v557, %v557
    %v771 = vmul.f32 %v560, %v560
    %v772 = vmul.f32 %v565, %v565
    %v773 = vmul.f32 %v568, %v568
    %v774 = vmul.f32 %v573, %v573
    %v775 = vmul.f32 %v576, %v576
    %v776 = vmul.f32 %v581, %v581
    %v777 = vmul.f32 %v584, %v584
    %v778 = vmul.f32 %v589, %v589
    %v779 = vmul.f32 %v592, %v592
    %v780 = vmul.f32 %v597, %v597
    %v781 = vmul.f32 %v600, %v600
    %v782 = vmul.f32 %v605, %v605
    %v783 = vmul.f32 %v608, %v608
    %v784 = vmul.f32 %v613, %v613
    %v785 = vmul.f32 %v616, %v616
    %v786 = vmul.f32 %v621, %v621
    %v787 = vmul.f32 %v624, %v624
    %v788 = vmul.f32 %v629, %v629
    %v789 = vmul.f32 %v632, %v632
    %v790 = vmul.f32 %v637, %v637
    %v791 = vmul.f32 %v640, %v640
    %v792 = vmul.f32 %v645, %v645
    %v793 = vmul.f32 %v648, %v648
    %v794 = vmul.f32 %v653, %v653
    %v795 = vmul.f32 %v656, %v656
    %v796 = vadd.f32 %v732, %v733
    %v797 = vadd.f32 %v796, %v734
    %v798 = vadd.f32 %v797, %v735
    %v799 = vadd.f32 %v798, %v736
    %v800 = vadd.f32 %v799, %v737
    %v801 = vadd.f32 %v800, %v738
    %v802 = vadd.f32 %v801, %v739
    %v803 = vadd.f32 %v802, %v740
    %v804 = vadd.f32 %v803, %v741
    %v805 = vadd.f32 %v804, %v742
    %v806 = vadd.f32 %v805, %v743
    %v807 = vadd.f32 %v806, %v744
    %v808 = vadd.f32 %v807, %v745
    %v809 = vadd.f32 %v808, %v746
    %v810 = vadd.f32 %v809, %v747
    %v811 = vadd.f32 %v810, %v748
    %v812 = vadd.f32 %v811, %v749
    %v813 = vadd.f32 %v812, %v750
    %v814 = vadd.f32 %v813, %v751
    %v815 = vadd.f32 %v814, %v752
    %v816 = vadd.f32 %v815, %v753
    %v817 = vadd.f32 %v816, %v754
    %v818 = vadd.f32 %v817, %v755
    %v819 = vadd.f32 %v818, %v756
    %v820 = vadd.f32 %v819, %v757
    %v821 = vadd.f32 %v820, %v758
    %v822 = vadd.f32 %v821, %v759
    %v823 = vadd.f32 %v822, %v760
    %v824 = vadd.f32 %v823, %v761
    %v825 = vadd.f32 %v824, %v762
    %v826 = vadd.f32 %v825, %v763
    %v827 = vadd.f32 %v826, %v764
    %v828 = vadd.f32 %v827, %v765
    %v829 = vadd.f32 %v828, %v766
    %v830 = vadd.f32 %v829, %v767
    %v831 = vadd.f32 %v830, %v768
    %v832 = vadd.f32 %v831, %v769
    %v833 = vadd.f32 %v832, %v770
    %v834 = vadd.f32 %v833, %v771
    %v835 = vadd.f32 %v834, %v772
    %v836 = vadd.f32 %v835, %v773
    %v837 = vadd.f32 %v836, %v774
    %v838 = vadd.f32 %v837, %v775
    %v839 = vadd.f32 %v838, %v776
    %v840 = vadd.f32 %v839, %v777
    %v841 = vadd.f32 %v840, %v778
    %v842 = vadd.f32 %v841, %v779
    %v843 = vadd.f32 %v842, %v780
    %v844 = vadd.f32 %v843, %v781
    %v845 = vadd.f32 %v844, %v782
    %v846 = vadd.f32 %v845, %v783
    %v847 = vadd.f32 %v846, %v784
    %v848 = vadd.f32 %v847, %v785
    %v849 = vadd.f32 %v848, %v786
    %v850 = vadd.f32 %v849, %v787
    %v851 = vadd.f32 %v850, %v788
    %v852 = vadd.f32 %v851, %v789
    %v853 = vadd.f32 %v852, %v790
    %v854 = vadd.f32 %v853, %v791
    %v855 = vadd.f32 %v854, %v792
    %v856 = vadd.f32 %v855, %v793
    %v857 = vadd.f32 %v856, %v794
    %v858 = vadd.f32 %v857, %v795
    %v859 = vrot.slane %v858, 4
    %v860 = vadd.f32 %v858, %v859
    %v861 = vrot.slane %v860, 2
    %v862 = vadd.f32 %v860, %v861
    %v863 = vrot.slane %v862, 1
    %v864 = vadd.f32 %v862, %v863
    %v865 = vadd.f32 %v731, %v864
    %866 = vst [vmem:[#allocation3] sm:$0x1] %v865
    %s867 = smul.u32 0, 512
    %s868 = scalar_lea.vmem [#allocation4], %s867
    %869 = vst [vmem:[%s868] sm:$0xff] %v405
    %870 = vst [vmem:[%s868 + $0x8] sm:$0xff] %v408
    %871 = vst [vmem:[%s868 + $0x10] sm:$0xff] %v413
    %872 = vst [vmem:[%s868 + $0x18] sm:$0xff] %v416
    %873 = vst [vmem:[%s868 + $0x20] sm:$0xff] %v421
    %874 = vst [vmem:[%s868 + $0x28] sm:$0xff] %v424
    %875 = vst [vmem:[%s868 + $0x30] sm:$0xff] %v429
    %876 = vst [vmem:[%s868 + $0x38] sm:$0xff] %v432
    %877 = vst [vmem:[%s868 + $0x40] sm:$0xff] %v437
    %878 = vst [vmem:[%s868 + $0x48] sm:$0xff] %v440
    %879 = vst [vmem:[%s868 + $0x50] sm:$0xff] %v445
    %880 = vst [vmem:[%s868 + $0x58] sm:$0xff] %v448
    %881 = vst [vmem:[%s868 + $0x60] sm:$0xff] %v453
    %882 = vst [vmem:[%s868 + $0x68] sm:$0xff] %v456
    %883 = vst [vmem:[%s868 + $0x70] sm:$0xff] %v461
    %884 = vst [vmem:[%s868 + $0x78] sm:$0xff] %v464
    %885 = vst [vmem:[%s868 + $0x80] sm:$0xff] %v469
    %886 = vst [vmem:[%s868 + $0x88] sm:$0xff] %v472
    %887 = vst [vmem:[%s868 + $0x90] sm:$0xff] %v477
    %888 = vst [vmem:[%s868 + $0x98] sm:$0xff] %v480
    %889 = vst [vmem:[%s868 + $0xa0] sm:$0xff] %v485
    %890 = vst [vmem:[%s868 + $0xa8] sm:$0xff] %v488
    %891 = vst [vmem:[%s868 + $0xb0] sm:$0xff] %v493
    %892 = vst [vmem:[%s868 + $0xb8] sm:$0xff] %v496
    %893 = vst [vmem:[%s868 + $0xc0] sm:$0xff] %v501
    %894 = vst [vmem:[%s868 + $0xc8] sm:$0xff] %v504
    %895 = vst [vmem:[%s868 + $0xd0] sm:$0xff] %v509
    %896 = vst [vmem:[%s868 + $0xd8] sm:$0xff] %v512
    %897 = vst [vmem:[%s868 + $0xe0] sm:$0xff] %v517
    %898 = vst [vmem:[%s868 + $0xe8] sm:$0xff] %v520
    %899 = vst [vmem:[%s868 + $0xf0] sm:$0xff] %v525
    %900 = vst [vmem:[%s868 + $0xf8] sm:$0xff] %v528
    %901 = vst [vmem:[%s868 + $0x100] sm:$0xff] %v533
    %902 = vst [vmem:[%s868 + $0x108] sm:$0xff] %v536
    %903 = vst [vmem:[%s868 + $0x110] sm:$0xff] %v541
    %904 = vst [vmem:[%s868 + $0x118] sm:$0xff] %v544
    %905 = vst [vmem:[%s868 + $0x120] sm:$0xff] %v549
    %906 = vst [vmem:[%s868 + $0x128] sm:$0xff] %v552
    %907 = vst [vmem:[%s868 + $0x130] sm:$0xff] %v557
    %908 = vst [vmem:[%s868 + $0x138] sm:$0xff] %v560
    %909 = vst [vmem:[%s868 + $0x140] sm:$0xff] %v565
    %910 = vst [vmem:[%s868 + $0x148] sm:$0xff] %v568
    %911 = vst [vmem:[%s868 + $0x150] sm:$0xff] %v573
    %912 = vst [vmem:[%s868 + $0x158] sm:$0xff] %v576
    %913 = vst [vmem:[%s868 + $0x160] sm:$0xff] %v581
    %914 = vst [vmem:[%s868 + $0x168] sm:$0xff] %v584
    %915 = vst [vmem:[%s868 + $0x170] sm:$0xff] %v589
    %916 = vst [vmem:[%s868 + $0x178] sm:$0xff] %v592
    %917 = vst [vmem:[%s868 + $0x180] sm:$0xff] %v597
    %918 = vst [vmem:[%s868 + $0x188] sm:$0xff] %v600
    %919 = vst [vmem:[%s868 + $0x190] sm:$0xff] %v605
    %920 = vst [vmem:[%s868 + $0x198] sm:$0xff] %v608
    %921 = vst [vmem:[%s868 + $0x1a0] sm:$0xff] %v613
    %922 = vst [vmem:[%s868 + $0x1a8] sm:$0xff] %v616
    %923 = vst [vmem:[%s868 + $0x1b0] sm:$0xff] %v621
    %924 = vst [vmem:[%s868 + $0x1b8] sm:$0xff] %v624
    %925 = vst [vmem:[%s868 + $0x1c0] sm:$0xff] %v629
    %926 = vst [vmem:[%s868 + $0x1c8] sm:$0xff] %v632
    %927 = vst [vmem:[%s868 + $0x1d0] sm:$0xff] %v637
    %928 = vst [vmem:[%s868 + $0x1d8] sm:$0xff] %v640
    %929 = vst [vmem:[%s868 + $0x1e0] sm:$0xff] %v645
    %930 = vst [vmem:[%s868 + $0x1e8] sm:$0xff] %v648
    %931 = vst [vmem:[%s868 + $0x1f0] sm:$0xff] %v653
    %932 = vst [vmem:[%s868 + $0x1f8] sm:$0xff] %v656
    // Predicated region
    $region22: #{tpu_custom_call.1} parent=1 // pred_check
      %p933 = pneg %p19
    $region23: #{tpu_custom_call.1} parent=1 // pred_check_branch
      %935 = sbr.rel (%p933) target = $region25
    $region24: #{tpu_custom_call.1} parent=1 // pred_region
      %v936 = vld [vmem:[#allocation2] sm:$0x1]
      %v937 = vmul.f32 %v936, 0.001953125
      %v938 = vld [vmem:[#allocation3] sm:$0x1]
      %v939 = vmul.f32 %v938, 0.001953125
      %v940 = vmul.f32 %v937, %v937
      %v941 = vsub.f32 %v939, %v940
      %v942 = vmax.f32 %v941, 0.0
      %v943 = vadd.f32 %v942, 1e-05
      %v944 = vrsqrt.pop %v943
      %v945 = vld [vmem:[%s2] sm:$0x1]
      %v946 = vmul.f32 %v944, %v945
      %v947 = vld [vmem:[%s3] sm:$0x1]
      %v948 = vmul.f32 %v937, %v946
      %v949 = vsub.f32 %v947, %v948
      %v950 = vld [vmem:[#allocation4] sm:$0xff]
      %v951 = vld [vmem:[#allocation4 + $0x8] sm:$0xff]
      %v952 = vld [vmem:[#allocation4 + $0x10] sm:$0xff]
      %v953 = vld [vmem:[#allocation4 + $0x18] sm:$0xff]
      %v954 = vld [vmem:[#allocation4 + $0x20] sm:$0xff]
      %v955 = vld [vmem:[#allocation4 + $0x28] sm:$0xff]
      %v956 = vld [vmem:[#allocation4 + $0x30] sm:$0xff]
      %v957 = vld [vmem:[#allocation4 + $0x38] sm:$0xff]
      %v958 = vld [vmem:[#allocation4 + $0x40] sm:$0xff]
      %v959 = vld [vmem:[#allocation4 + $0x48] sm:$0xff]
      %v960 = vld [vmem:[#allocation4 + $0x50] sm:$0xff]
      %v961 = vld [vmem:[#allocation4 + $0x58] sm:$0xff]
      %v962 = vld [vmem:[#allocation4 + $0x60] sm:$0xff]
      %v963 = vld [vmem:[#allocation4 + $0x68] sm:$0xff]
      %v964 = vld [vmem:[#allocation4 + $0x70] sm:$0xff]
      %v965 = vld [vmem:[#allocation4 + $0x78] sm:$0xff]
      %v966 = vld [vmem:[#allocation4 + $0x80] sm:$0xff]
      %v967 = vld [vmem:[#allocation4 + $0x88] sm:$0xff]
      %v968 = vld [vmem:[#allocation4 + $0x90] sm:$0xff]
      %v969 = vld [vmem:[#allocation4 + $0x98] sm:$0xff]
      %v970 = vld [vmem:[#allocation4 + $0xa0] sm:$0xff]
      %v971 = vld [vmem:[#allocation4 + $0xa8] sm:$0xff]
      %v972 = vld [vmem:[#allocation4 + $0xb0] sm:$0xff]
      %v973 = vld [vmem:[#allocation4 + $0xb8] sm:$0xff]
      %v974 = vld [vmem:[#allocation4 + $0xc0] sm:$0xff]
      %v975 = vld [vmem:[#allocation4 + $0xc8] sm:$0xff]
      %v976 = vld [vmem:[#allocation4 + $0xd0] sm:$0xff]
      %v977 = vld [vmem:[#allocation4 + $0xd8] sm:$0xff]
      %v978 = vld [vmem:[#allocation4 + $0xe0] sm:$0xff]
      %v979 = vld [vmem:[#allocation4 + $0xe8] sm:$0xff]
      %v980 = vld [vmem:[#allocation4 + $0xf0] sm:$0xff]
      %v981 = vld [vmem:[#allocation4 + $0xf8] sm:$0xff]
      %v982 = vld [vmem:[#allocation4 + $0x100] sm:$0xff]
      %v983 = vld [vmem:[#allocation4 + $0x108] sm:$0xff]
      %v984 = vld [vmem:[#allocation4 + $0x110] sm:$0xff]
      %v985 = vld [vmem:[#allocation4 + $0x118] sm:$0xff]
      %v986 = vld [vmem:[#allocation4 + $0x120] sm:$0xff]
      %v987 = vld [vmem:[#allocation4 + $0x128] sm:$0xff]
      %v988 = vld [vmem:[#allocation4 + $0x130] sm:$0xff]
      %v989 = vld [vmem:[#allocation4 + $0x138] sm:$0xff]
      %v990 = vld [vmem:[#allocation4 + $0x140] sm:$0xff]
      %v991 = vld [vmem:[#allocation4 + $0x148] sm:$0xff]
      %v992 = vld [vmem:[#allocation4 + $0x150] sm:$0xff]
      %v993 = vld [vmem:[#allocation4 + $0x158] sm:$0xff]
      %v994 = vld [vmem:[#allocation4 + $0x160] sm:$0xff]
      %v995 = vld [vmem:[#allocation4 + $0x168] sm:$0xff]
      %v996 = vld [vmem:[#allocation4 + $0x170] sm:$0xff]
      %v997 = vld [vmem:[#allocation4 + $0x178] sm:$0xff]
      %v998 = vld [vmem:[#allocation4 + $0x180] sm:$0xff]
      %v999 = vld [vmem:[#allocation4 + $0x188] sm:$0xff]
      %v1000 = vld [vmem:[#allocation4 + $0x190] sm:$0xff]
      %v1001 = vld [vmem:[#allocation4 + $0x198] sm:$0xff]
      %v1002 = vld [vmem:[#allocation4 + $0x1a0] sm:$0xff]
      %v1003 = vld [vmem:[#allocation4 + $0x1a8] sm:$0xff]
      %v1004 = vld [vmem:[#allocation4 + $0x1b0] sm:$0xff]
      %v1005 = vld [vmem:[#allocation4 + $0x1b8] sm:$0xff]
      %v1006 = vld [vmem:[#allocation4 + $0x1c0] sm:$0xff]
      %v1007 = vld [vmem:[#allocation4 + $0x1c8] sm:$0xff]
      %v1008 = vld [vmem:[#allocation4 + $0x1d0] sm:$0xff]
      %v1009 = vld [vmem:[#allocation4 + $0x1d8] sm:$0xff]
      %v1010 = vld [vmem:[#allocation4 + $0x1e0] sm:$0xff]
      %v1011 = vld [vmem:[#allocation4 + $0x1e8] sm:$0xff]
      %v1012 = vld [vmem:[#allocation4 + $0x1f0] sm:$0xff]
      %v1013 = vld [vmem:[#allocation4 + $0x1f8] sm:$0xff]
      %v1015 = vlaneseq
      %v1016 = vshrl.u32 %v1015, 7
      %v1017 = vsub.s32 0, %v1016
      %v1018 = vrot.slane %v946, %v1017
      %v1020 = vmul.f32 %v950, %v1018
      %v1021 = vmul.f32 %v951, %v1018
      %v1022 = vmul.f32 %v952, %v1018
      %v1023 = vmul.f32 %v953, %v1018
      %v1024 = vmul.f32 %v954, %v1018
      %v1025 = vmul.f32 %v955, %v1018
      %v1026 = vmul.f32 %v956, %v1018
      %v1027 = vmul.f32 %v957, %v1018
      %v1028 = vmul.f32 %v958, %v1018
      %v1029 = vmul.f32 %v959, %v1018
      %v1030 = vmul.f32 %v960, %v1018
      %v1031 = vmul.f32 %v961, %v1018
      %v1032 = vmul.f32 %v962, %v1018
      %v1033 = vmul.f32 %v963, %v1018
      %v1034 = vmul.f32 %v964, %v1018
      %v1035 = vmul.f32 %v965, %v1018
      %v1036 = vmul.f32 %v966, %v1018
      %v1037 = vmul.f32 %v967, %v1018
      %v1038 = vmul.f32 %v968, %v1018
      %v1039 = vmul.f32 %v969, %v1018
      %v1040 = vmul.f32 %v970, %v1018
      %v1041 = vmul.f32 %v971, %v1018
      %v1042 = vmul.f32 %v972, %v1018
      %v1043 = vmul.f32 %v973, %v1018
      %v1044 = vmul.f32 %v974, %v1018
      %v1045 = vmul.f32 %v975, %v1018
      %v1046 = vmul.f32 %v976, %v1018
      %v1047 = vmul.f32 %v977, %v1018
      %v1048 = vmul.f32 %v978, %v1018
      %v1049 = vmul.f32 %v979, %v1018
      %v1050 = vmul.f32 %v980, %v1018
      %v1051 = vmul.f32 %v981, %v1018
      %v1052 = vmul.f32 %v982, %v1018
      %v1053 = vmul.f32 %v983, %v1018
      %v1054 = vmul.f32 %v984, %v1018
      %v1055 = vmul.f32 %v985, %v1018
      %v1056 = vmul.f32 %v986, %v1018
      %v1057 = vmul.f32 %v987, %v1018
      %v1058 = vmul.f32 %v988, %v1018
      %v1059 = vmul.f32 %v989, %v1018
      %v1060 = vmul.f32 %v990, %v1018
      %v1061 = vmul.f32 %v991, %v1018
      %v1062 = vmul.f32 %v992, %v1018
      %v1063 = vmul.f32 %v993, %v1018
      %v1064 = vmul.f32 %v994, %v1018
      %v1065 = vmul.f32 %v995, %v1018
      %v1066 = vmul.f32 %v996, %v1018
      %v1067 = vmul.f32 %v997, %v1018
      %v1068 = vmul.f32 %v998, %v1018
      %v1069 = vmul.f32 %v999, %v1018
      %v1070 = vmul.f32 %v1000, %v1018
      %v1071 = vmul.f32 %v1001, %v1018
      %v1072 = vmul.f32 %v1002, %v1018
      %v1073 = vmul.f32 %v1003, %v1018
      %v1074 = vmul.f32 %v1004, %v1018
      %v1075 = vmul.f32 %v1005, %v1018
      %v1076 = vmul.f32 %v1006, %v1018
      %v1077 = vmul.f32 %v1007, %v1018
      %v1078 = vmul.f32 %v1008, %v1018
      %v1079 = vmul.f32 %v1009, %v1018
      %v1080 = vmul.f32 %v1010, %v1018
      %v1081 = vmul.f32 %v1011, %v1018
      %v1082 = vmul.f32 %v1012, %v1018
      %v1083 = vmul.f32 %v1013, %v1018
      %v1085 = vlaneseq
      %v1086 = vshrl.u32 %v1085, 7
      %v1087 = vsub.s32 0, %v1086
      %v1088 = vrot.slane %v949, %v1087
      %v1090 = vadd.f32 %v1020, %v1088
      %v1091 = vadd.f32 %v1021, %v1088
      %v1092 = vadd.f32 %v1022, %v1088
      %v1093 = vadd.f32 %v1023, %v1088
      %v1094 = vadd.f32 %v1024, %v1088
      %v1095 = vadd.f32 %v1025, %v1088
      %v1096 = vadd.f32 %v1026, %v1088
      %v1097 = vadd.f32 %v1027, %v1088
      %v1098 = vadd.f32 %v1028, %v1088
      %v1099 = vadd.f32 %v1029, %v1088
      %v1100 = vadd.f32 %v1030, %v1088
      %v1101 = vadd.f32 %v1031, %v1088
      %v1102 = vadd.f32 %v1032, %v1088
      %v1103 = vadd.f32 %v1033, %v1088
      %v1104 = vadd.f32 %v1034, %v1088
      %v1105 = vadd.f32 %v1035, %v1088
      %v1106 = vadd.f32 %v1036, %v1088
      %v1107 = vadd.f32 %v1037, %v1088
      %v1108 = vadd.f32 %v1038, %v1088
      %v1109 = vadd.f32 %v1039, %v1088
      %v1110 = vadd.f32 %v1040, %v1088
      %v1111 = vadd.f32 %v1041, %v1088
      %v1112 = vadd.f32 %v1042, %v1088
      %v1113 = vadd.f32 %v1043, %v1088
      %v1114 = vadd.f32 %v1044, %v1088
      %v1115 = vadd.f32 %v1045, %v1088
      %v1116 = vadd.f32 %v1046, %v1088
      %v1117 = vadd.f32 %v1047, %v1088
      %v1118 = vadd.f32 %v1048, %v1088
      %v1119 = vadd.f32 %v1049, %v1088
      %v1120 = vadd.f32 %v1050, %v1088
      %v1121 = vadd.f32 %v1051, %v1088
      %v1122 = vadd.f32 %v1052, %v1088
      %v1123 = vadd.f32 %v1053, %v1088
      %v1124 = vadd.f32 %v1054, %v1088
      %v1125 = vadd.f32 %v1055, %v1088
      %v1126 = vadd.f32 %v1056, %v1088
      %v1127 = vadd.f32 %v1057, %v1088
      %v1128 = vadd.f32 %v1058, %v1088
      %v1129 = vadd.f32 %v1059, %v1088
      %v1130 = vadd.f32 %v1060, %v1088
      %v1131 = vadd.f32 %v1061, %v1088
      %v1132 = vadd.f32 %v1062, %v1088
      %v1133 = vadd.f32 %v1063, %v1088
      %v1134 = vadd.f32 %v1064, %v1088
      %v1135 = vadd.f32 %v1065, %v1088
      %v1136 = vadd.f32 %v1066, %v1088
      %v1137 = vadd.f32 %v1067, %v1088
      %v1138 = vadd.f32 %v1068, %v1088
      %v1139 = vadd.f32 %v1069, %v1088
      %v1140 = vadd.f32 %v1070, %v1088
      %v1141 = vadd.f32 %v1071, %v1088
      %v1142 = vadd.f32 %v1072, %v1088
      %v1143 = vadd.f32 %v1073, %v1088
      %v1144 = vadd.f32 %v1074, %v1088
      %v1145 = vadd.f32 %v1075, %v1088
      %v1146 = vadd.f32 %v1076, %v1088
      %v1147 = vadd.f32 %v1077, %v1088
      %v1148 = vadd.f32 %v1078, %v1088
      %v1149 = vadd.f32 %v1079, %v1088
      %v1150 = vadd.f32 %v1080, %v1088
      %v1151 = vadd.f32 %v1081, %v1088
      %v1152 = vadd.f32 %v1082, %v1088
      %v1153 = vadd.f32 %v1083, %v1088
      %1154 = vst [vmem:[#allocation4] sm:$0xff] %v1090
      %1155 = vst [vmem:[#allocation4 + $0x8] sm:$0xff] %v1091
      %1156 = vst [vmem:[#allocation4 + $0x10] sm:$0xff] %v1092
      %1157 = vst [vmem:[#allocation4 + $0x18] sm:$0xff] %v1093
      %1158 = vst [vmem:[#allocation4 + $0x20] sm:$0xff] %v1094
      %1159 = vst [vmem:[#allocation4 + $0x28] sm:$0xff] %v1095
      %1160 = vst [vmem:[#allocation4 + $0x30] sm:$0xff] %v1096
      %1161 = vst [vmem:[#allocation4 + $0x38] sm:$0xff] %v1097
      %1162 = vst [vmem:[#allocation4 + $0x40] sm:$0xff] %v1098
      %1163 = vst [vmem:[#allocation4 + $0x48] sm:$0xff] %v1099
      %1164 = vst [vmem:[#allocation4 + $0x50] sm:$0xff] %v1100
      %1165 = vst [vmem:[#allocation4 + $0x58] sm:$0xff] %v1101
      %1166 = vst [vmem:[#allocation4 + $0x60] sm:$0xff] %v1102
      %1167 = vst [vmem:[#allocation4 + $0x68] sm:$0xff] %v1103
      %1168 = vst [vmem:[#allocation4 + $0x70] sm:$0xff] %v1104
      %1169 = vst [vmem:[#allocation4 + $0x78] sm:$0xff] %v1105
      %1170 = vst [vmem:[#allocation4 + $0x80] sm:$0xff] %v1106
      %1171 = vst [vmem:[#allocation4 + $0x88] sm:$0xff] %v1107
      %1172 = vst [vmem:[#allocation4 + $0x90] sm:$0xff] %v1108
      %1173 = vst [vmem:[#allocation4 + $0x98] sm:$0xff] %v1109
      %1174 = vst [vmem:[#allocation4 + $0xa0] sm:$0xff] %v1110
      %1175 = vst [vmem:[#allocation4 + $0xa8] sm:$0xff] %v1111
      %1176 = vst [vmem:[#allocation4 + $0xb0] sm:$0xff] %v1112
      %1177 = vst [vmem:[#allocation4 + $0xb8] sm:$0xff] %v1113
      %1178 = vst [vmem:[#allocation4 + $0xc0] sm:$0xff] %v1114
      %1179 = vst [vmem:[#allocation4 + $0xc8] sm:$0xff] %v1115
      %1180 = vst [vmem:[#allocation4 + $0xd0] sm:$0xff] %v1116
      %1181 = vst [vmem:[#allocation4 + $0xd8] sm:$0xff] %v1117
      %1182 = vst [vmem:[#allocation4 + $0xe0] sm:$0xff] %v1118
      %1183 = vst [vmem:[#allocation4 + $0xe8] sm:$0xff] %v1119
      %1184 = vst [vmem:[#allocation4 + $0xf0] sm:$0xff] %v1120
      %1185 = vst [vmem:[#allocation4 + $0xf8] sm:$0xff] %v1121
      %1186 = vst [vmem:[#allocation4 + $0x100] sm:$0xff] %v1122
      %1187 = vst [vmem:[#allocation4 + $0x108] sm:$0xff] %v1123
      %1188 = vst [vmem:[#allocation4 + $0x110] sm:$0xff] %v1124
      %1189 = vst [vmem:[#allocation4 + $0x118] sm:$0xff] %v1125
      %1190 = vst [vmem:[#allocation4 + $0x120] sm:$0xff] %v1126
      %1191 = vst [vmem:[#allocation4 + $0x128] sm:$0xff] %v1127
      %1192 = vst [vmem:[#allocation4 + $0x130] sm:$0xff] %v1128
      %1193 = vst [vmem:[#allocation4 + $0x138] sm:$0xff] %v1129
      %1194 = vst [vmem:[#allocation4 + $0x140] sm:$0xff] %v1130
      %1195 = vst [vmem:[#allocation4 + $0x148] sm:$0xff] %v1131
      %1196 = vst [vmem:[#allocation4 + $0x150] sm:$0xff] %v1132
      %1197 = vst [vmem:[#allocation4 + $0x158] sm:$0xff] %v1133
      %1198 = vst [vmem:[#allocation4 + $0x160] sm:$0xff] %v1134
      %1199 = vst [vmem:[#allocation4 + $0x168] sm:$0xff] %v1135
      %1200 = vst [vmem:[#allocation4 + $0x170] sm:$0xff] %v1136
      %1201 = vst [vmem:[#allocation4 + $0x178] sm:$0xff] %v1137
      %1202 = vst [vmem:[#allocation4 + $0x180] sm:$0xff] %v1138
      %1203 = vst [vmem:[#allocation4 + $0x188] sm:$0xff] %v1139
      %1204 = vst [vmem:[#allocation4 + $0x190] sm:$0xff] %v1140
      %1205 = vst [vmem:[#allocation4 + $0x198] sm:$0xff] %v1141
      %1206 = vst [vmem:[#allocation4 + $0x1a0] sm:$0xff] %v1142
      %1207 = vst [vmem:[#allocation4 + $0x1a8] sm:$0xff] %v1143
      %1208 = vst [vmem:[#allocation4 + $0x1b0] sm:$0xff] %v1144
      %1209 = vst [vmem:[#allocation4 + $0x1b8] sm:$0xff] %v1145
      %1210 = vst [vmem:[#allocation4 + $0x1c0] sm:$0xff] %v1146
      %1211 = vst [vmem:[#allocation4 + $0x1c8] sm:$0xff] %v1147
      %1212 = vst [vmem:[#allocation4 + $0x1d0] sm:$0xff] %v1148
      %1213 = vst [vmem:[#allocation4 + $0x1d8] sm:$0xff] %v1149
      %1214 = vst [vmem:[#allocation4 + $0x1e0] sm:$0xff] %v1150
      %1215 = vst [vmem:[#allocation4 + $0x1e8] sm:$0xff] %v1151
      %1216 = vst [vmem:[#allocation4 + $0x1f0] sm:$0xff] %v1152
      %1217 = vst [vmem:[#allocation4 + $0x1f8] sm:$0xff] %v1153
    $region25: #{tpu_custom_call.1} parent=1 // pred_fallthru
      _
    // Predicated region
    $region26: #{tpu_custom_call.1} parent=1 // pred_check
      _
    $region27: #{tpu_custom_call.1} parent=1 // pred_check_branch
      %1219 = sbr.rel (0) target = $region29
    $region28: #{tpu_custom_call.1} parent=1 // pred_region
      %s1221 = ssub.s32 8192, 8192
      %1222 = vsyncadd [#allocation5], %s1221
      %s1223 = sshll.u32 [#allocation4], 4
      %s1224 = int_to_ptr.vmem [resolvable:$true] %s1223
      %1229 = dma.vmem_to_hbm [thread:$0]  %s1224, 8192, %s4, [#allocation5], 128, 128, 8
    $region29: #{tpu_custom_call.1} parent=1 // pred_fallthru
      _
    // Predicated region
    $region30: #{tpu_custom_call.1} parent=1 // pred_check
      _
    $region31: #{tpu_custom_call.1} parent=1 // pred_check_branch
      %1231 = sbr.rel (0) target = $region33
    $region32: #{tpu_custom_call.1} parent=1 // pred_region
      %1232 = dma.done [#allocation5], 8192
    $region33: #{tpu_custom_call.1} parent=1 // pred_fallthru
      _
    %1233 = vsyncpa [#allocation5], 1

</llo_original>
